<compile_context>
chip_gen: v7x
topology: tpu7x:2x2x1
jax: 0.10.0
libtpu: 0.0.40
codegen_flags: <defaults>
</compile_context>

<pallas_src>
import jax
import jax.numpy as jnp
from jax.experimental import pallas as pl
from jax.experimental.pallas import tpu as pltpu


def _copy_kernel(x_ref, o_ref):
    # Whole hot path of identityNN-with-materialization: out = in.
    o_ref[...] = x_ref[...]


def _vmem_budgets():
    """Generation-aware (tile_byte_budget, vmem_limit_bytes)."""
    try:
        info = pltpu.get_tpu_info()
        vmem_cap = int(getattr(info, "vmem_capacity_bytes", 0)) or (64 << 20)
    except Exception:
        vmem_cap = 64 << 20  # conservative default if query unavailable
    if vmem_cap >= (128 << 20):
        # v5e / v6e: 128 MiB physical VMEM — big tiles, generous limit.
        #   2 in-buffers + 2 out-buffers at 8 MiB = 32 MiB << 64 MiB limit.
        return 8 << 20, 64 << 20
    # v7x (64 MiB per TC) or unknown: smaller tiles, limit <= ~40 MiB.
    #   4 x 4 MiB = 16 MiB of double buffers, ample scratch headroom.
    limit = min(40 << 20, max(16 << 20, vmem_cap * 5 // 8))
    return 4 << 20, limit


def _sublane_multiple(itemsize):
    """Packed-sublane multiple for the dtype: 8 (f32), 16 (bf16), 32 (int8)."""
    if itemsize >= 4:
        return 8
    return 8 * (4 // itemsize)


def _lane_dense_2d(x):
    """Reshape x (free metadata) to a 2-D view that is lane-dense when possible."""
    total = int(x.size)
    # Prefer the widest multiple-of-128 last dim: bigger contiguous HBM runs
    # per DMA row and larger unmasked vst slabs.
    for width in (32768, 16384, 8192, 4096, 2048, 1024, 512, 256, 128):
        if total % width == 0:
            return x.reshape(total // width, width)
    # Fallback (total not a multiple of 128): keep the original trailing dim.
    # TODO(synk): copy the 128-aligned prefix lane-dense and only the <128-elem
    # tail through the masked path when this fallback shows up in profiles.
    if x.ndim >= 2:
        return x.reshape(-1, x.shape[-1])
    return x.reshape(1, total)


def _choose_tiles(R, C, itemsize, sublane, target_bytes):
    """Pick (tile_r, tile_c): multiples of (sublane, 128) or full dims,
    ~target_bytes per block, full-width preferred, >=2 blocks when large."""
    row_bytes = max(1, C * itemsize)

    if C % 128 == 0 and sublane * row_bytes > target_bytes:
        # Even one sublane-row full-width slab blows the budget: slice columns.
        tile_c = max(128, ((target_bytes // (sublane * itemsize)) // 128) * 128)
        tile_c = min(tile_c, C)
        tile_r = R if R < sublane else sublane
    else:
        # Full-width tiles: each block is one contiguous HBM region.
        tile_c = C
        rows_budget = max(1, target_bytes // row_bytes)
        if rows_budget >= R:
            tile_r = R  # whole array in one block (full-dim, exempt from 8-rule)
        else:
            tile_r = max(sublane, (rows_budget // sublane) * sublane)
            if tile_r > R:
                tile_r = R

    # Megacore: if the grid collapsed to (1,1) but the array is big enough,
    # split rows so both TensorCores (v7x) get a block to stream.
    if (tile_r == R and tile_c == C and R >= 2 * sublane
            and R * row_bytes >= (1 << 20)):
        half = (R + 1) // 2
        tile_r = ((half + sublane - 1) // sublane) * sublane
        if tile_r >= R:
            tile_r = R

    return int(tile_r), int(tile_c)


def identity_copy_pallas(x):
    """Explicit-materialization identity: streams x HBM->HBM through a Pallas
    tiled copy and returns a fresh buffer equal to x."""
    x = jnp.asarray(x)
    orig_shape = x.shape
    orig_dtype = x.dtype

    if x.size == 0:
        # Nothing to copy; never reach pallas_call with a zero-sized grid.
        return jnp.zeros(orig_shape, orig_dtype)

    itemsize = jnp.dtype(orig_dtype).itemsize
    sublane = _sublane_multiple(itemsize)
    target_bytes, vmem_limit = _vmem_budgets()

    x2 = _lane_dense_2d(x)
    R, C = int(x2.shape[0]), int(x2.shape[1])

    tile_r, tile_c = _choose_tiles(R, C, itemsize, sublane, target_bytes)
    grid = (pl.cdiv(R, tile_r), pl.cdiv(C, tile_c))

    out2 = pl.pallas_call(
        _copy_kernel,
        out_shape=jax.ShapeDtypeStruct((R, C), orig_dtype),
        grid_spec=pl.GridSpec(
            grid=grid,
            in_specs=[pl.BlockSpec((tile_r, tile_c), lambda i, j: (i, j))],
            out_specs=pl.BlockSpec((tile_r, tile_c), lambda i, j: (i, j)),
        ),
        compiler_params=pltpu.CompilerParams(
            dimension_semantics=("parallel", "parallel"),
            vmem_limit_bytes=vmem_limit,
        ),
        cost_estimate=pl.CostEstimate(
            flops=0,
            transcendentals=0,
            bytes_accessed=2 * R * C * itemsize,
        ),
    )(x2)

    return out2.reshape(orig_shape)


def identity_nn(x, shift=0, materialize=False):
    """Pallas-backed identityNN.forward(x, shift).

    Fast path (default): returns x with zero data movement — exactly the
    semantics of the PyTorch module, which returns the same tensor.
    If `materialize=True`, routes through the optimized Pallas copy kernel
    to produce a fresh buffer.
    """
    del shift  # accepted but unused, matching the reference module
    if materialize:
        return identity_copy_pallas(x)
    return x


if __name__ == "__main__":
    key = jax.random.PRNGKey(0)

    # Small shape consistent with a generic dense-network input: [batch, hidden].
    x = jax.random.normal(key, (8, 32), dtype=jnp.float32)

    # Fast (no-op) path — the true identityNN semantics.
    y_fast = jax.block_until_ready(identity_nn(x, shift=0))

    # Explicit-copy path — exercises the lane-dense Pallas kernel once.
    y_copy = jax.block_until_ready(identity_nn(x, shift=0, materialize=True))

    assert y_fast.shape == x.shape and y_fast.dtype == x.dtype
    assert y_copy.shape == x.shape and y_copy.dtype == x.dtype
    assert bool(jnp.all(y_fast == x))
    assert bool(jnp.all(y_copy == x))

    # Robustness checks: non-multiple-of-128 total (fallback reshape path)
    # and a zero-size input (guarded before pallas_call).
    x_odd = jax.random.normal(jax.random.PRNGKey(1), (3, 7, 5), dtype=jnp.float32)
    y_odd = jax.block_until_ready(identity_nn(x_odd, shift=1, materialize=True))
    assert y_odd.shape == x_odd.shape and bool(jnp.all(y_odd == x_odd))

    x_empty = jnp.zeros((0, 4), dtype=jnp.float32)
    y_empty = jax.block_until_ready(identity_nn(x_empty, materialize=True))
    assert y_empty.shape == x_empty.shape and y_empty.dtype == x_empty.dtype

    print("KERNEL_OK")
</pallas_src>

<mosaic_0001>
module attributes {stable_mosaic.version = 11 : i64} {
  func.func @_copy_kernel(%arg0: i32, %arg1: i32, %arg2: memref<1x256xf32, #tpu.memory_space<vmem>>, %arg3: memref<1x256xf32, #tpu.memory_space<vmem>>) attributes {dimension_semantics = [#tpu.dimension_semantics<parallel>, #tpu.dimension_semantics<parallel>], iteration_bounds = array<i64: 1, 1>, scalar_prefetch = 0 : i64, scratch_operands = 0 : i64, tpu.core_type = #tpu.core_type<tc>, window_params = [{transform_indices = @transform_0, window_bounds = array<i64: 1, 256>}, {transform_indices = @transform_1, window_bounds = array<i64: 1, 256>}]} {
    %c0 = arith.constant 0 : index
    %c0_0 = arith.constant 0 : index
    %0 = vector.load %arg2[%c0, %c0_0] : memref<1x256xf32, #tpu.memory_space<vmem>>, vector<1x256xf32>
    %c0_1 = arith.constant 0 : index
    %c0_2 = arith.constant 0 : index
    %1 = vector.load %arg3[%c0_1, %c0_2] : memref<1x256xf32, #tpu.memory_space<vmem>>, vector<1x256xf32>
    tpu.vector_store %arg3[%c0_1, %c0_2], %0 {strides = array<i32>} : memref<1x256xf32, #tpu.memory_space<vmem>>, vector<1x256xf32>,
    return
  }
  func.func @transform_0(%arg0: i32, %arg1: i32) -> (i32, i32) {
    %c0_i32 = arith.constant 0 : i32
    return %arg0, %arg1 : i32, i32
  }
  func.func @transform_1(%arg0: i32, %arg1: i32) -> (i32, i32) {
    %c0_i32 = arith.constant 0 : i32
    return %arg0, %arg1 : i32, i32
  }
}

</mosaic_0001>

<llo_original>
// kernel: tpu_custom_call.1
$region0: #{tpu_custom_call.1}
  #allocation0 [shape = 'u32[]', space=smem, size = 0x4, offset = 0x4, fixed_abs, tag = 'smem constant byte address 0x4 - core index']
  #allocation1 [shape = 'u32[144,128]{1,0:T(1,128)}', space=vmem, size = 0x12000, scoped, tag = 'internal scratch']
  %s0 = inlined_call_operand.hbm [shape: f32[1,256], index: 0, kind: input, shape index: {}]
  %s1 = inlined_call_operand.hbm [shape: f32[1,256], index: 1, kind: output, shape index: {}]
  %s2 = sld [smem:[#allocation0]]
  $region18: #{tpu_custom_call.1} parent=0
    _
  %s4 = ssub.s32 1, %s2
  %s5 = scalar_select 0, %s4, %s2
  $region1: #{tpu_custom_call.1} parent=0
    #allocation2 [shape = 'u8[1024]{0}', space=vmem, size = 0x400, scoped, tag = 'input window, operand 0, single buffered']
    #allocation3 [shape = 's32[1]{0}', space=sflag, size = 0x4, scoped, tag = 'scoped memory for tpu_custom_call.1']
    #allocation4 [shape = 's32[1]{0}', space=sflag, size = 0x4, scoped, tag = 'scoped memory for tpu_custom_call.1']
    #allocation5 [shape = 'u8[1024]{0}', space=vmem, size = 0x400, scoped, tag = 'output window, operand 0, single buffered']
    %6 = vsyncpa [#allocation3], 0
    %7 = vsyncpa [#allocation4], 0
    // Predicated region
    $region2: #{tpu_custom_call.1} parent=1 // pred_check
      _
    $region3: #{tpu_custom_call.1} parent=1 // pred_check_branch
      %9 = sbr.rel (0) target = $region5
    $region4: #{tpu_custom_call.1} parent=1 // pred_region
      %s11 = ssub.s32 32, 32
      %12 = vsyncadd [#allocation3], %s11
      %s14 = sshll.u32 [#allocation2], 4
      %s15 = int_to_ptr.vmem [resolvable:$true] %s14
      %17 = dma.hbm_to_vmem [thread:$0]  %s0, 32, %s15, [#allocation3]
    $region5: #{tpu_custom_call.1} parent=1 // pred_fallthru
      _
    // Predicated region
    $region6: #{tpu_custom_call.1} parent=1 // pred_check
      _
    $region7: #{tpu_custom_call.1} parent=1 // pred_check_branch
      %19 = sbr.rel (0) target = $region9
    $region8: #{tpu_custom_call.1} parent=1 // pred_region
      %20 = dma.done [#allocation3], 32
    $region9: #{tpu_custom_call.1} parent=1 // pred_fallthru
      _
    %v21 = vld [vmem:[#allocation2] sm:$0x3]
    %v22 = vlaneseq
    %vm23 = vcmp.ge.s32.totalorder %v22, 0
    %vm24 = vcmp.lt.s32.totalorder %v22, 256
    %vm25 = vmand %vm23, %vm24
    %26 = vst.msk [vmem:[#allocation5] sm:$0x3] %vm25, %v21
    // Predicated region
    $region10: #{tpu_custom_call.1} parent=1 // pred_check
      _
    $region11: #{tpu_custom_call.1} parent=1 // pred_check_branch
      %28 = sbr.rel (0) target = $region13
    $region12: #{tpu_custom_call.1} parent=1 // pred_region
      %s30 = ssub.s32 32, 32
      %31 = vsyncadd [#allocation4], %s30
      %s33 = sshll.u32 [#allocation5], 4
      %s34 = int_to_ptr.vmem [resolvable:$true] %s33
      %36 = dma.vmem_to_hbm [thread:$0]  %s34, 32, %s1, [#allocation4]
    $region13: #{tpu_custom_call.1} parent=1 // pred_fallthru
      _
    // Predicated region
    $region14: #{tpu_custom_call.1} parent=1 // pred_check
      _
    $region15: #{tpu_custom_call.1} parent=1 // pred_check_branch
      %38 = sbr.rel (0) target = $region17
    $region16: #{tpu_custom_call.1} parent=1 // pred_region
      %39 = dma.done [#allocation4], 32
    $region17: #{tpu_custom_call.1} parent=1 // pred_fallthru
      _
    %40 = vsyncpa [#allocation3], 1
    %41 = vsyncpa [#allocation4], 1

</llo_original>
